<compile_context>
chip_gen: v7x
topology: tpu7x:2x2x1
jax: 0.10.0
libtpu: 0.0.40
codegen_flags: <defaults>
</compile_context>

<pallas_src>
import functools

import jax
import jax.numpy as jnp
from jax.experimental import pallas as pl
from jax.experimental.pallas import tpu as pltpu


# ----------------------------------------------------------------------------
# Kernel
# ----------------------------------------------------------------------------
def deepq_kernel(x_ref, w1_ref, b1_ref, w2_ref, b2_ref, w3_ref, b3_ref, out_ref):
    # Compute dtype for MXU operands (bf16 on the fast path, f32 otherwise).
    cdt = w1_ref.dtype

    # Layer 1: (TB, F) @ (F, H) -> f32 acc, + f32 bias.  F=8 is tiny; the MXU
    # pads K internally, so no wrapper-side lane padding of x is needed.
    x = x_ref[...].astype(cdt)
    h1 = jnp.dot(x, w1_ref[...], preferred_element_type=jnp.float32) + b1_ref[...]

    # Layer 2: (TB, H) @ (H, H)
    h2 = jnp.dot(h1.astype(cdt), w2_ref[...],
                 preferred_element_type=jnp.float32) + b2_ref[...]

    # Output head: (TB, H) @ (H, A) — narrow real-width output, masked store.
    q = jnp.dot(h2.astype(cdt), w3_ref[...],
                preferred_element_type=jnp.float32) + b3_ref[...]

    out_ref[...] = q.astype(out_ref.dtype)


# ----------------------------------------------------------------------------
# Wrapper
# ----------------------------------------------------------------------------
_MAX_TILE_B = 1024  # sweep 1024-2048 if replay batches are very large


def _round_up(n, m):
    return ((n + m - 1) // m) * m


def prepare_params(w1, b1, w2, b2, w3, b3, *, use_bf16=True):
    """One-time parameter preparation (hoisted out of the forward path).

    Weights in (in, out) layout; biases (1, out).  Weights are cast to the
    MXU operand dtype, biases stay f32 for the VPU adds / f32 accumulation.
    """
    wdt = jnp.bfloat16 if use_bf16 else jnp.float32
    return (
        jnp.asarray(w1, wdt), jnp.asarray(b1, jnp.float32),
        jnp.asarray(w2, wdt), jnp.asarray(b2, jnp.float32),
        jnp.asarray(w3, wdt), jnp.asarray(b3, jnp.float32),
    )


@functools.partial(jax.jit, static_argnames=("tile_b",))
def deepq_forward(x, w1, b1, w2, b2, w3, b3, *, tile_b=None):
    """x: (B, F). Params from prepare_params(). Returns (B, n_actions) f32."""
    B, F = x.shape
    H = w1.shape[1]          # hidden dim (256)
    A = w3.shape[1]          # n_actions

    # PyTorch forward does x.float(); mirror it (no-op if already f32).
    x = x.astype(jnp.float32)

    # Batch tile heuristic:
    #  * tiny/online batch: a single minimal (8-row aligned) step.
    #  * larger batches: ~half the batch per step (so v7x's two TensorCores
    #    both get real rows via dimension_semantics=("parallel",)), capped at
    #    _MAX_TILE_B to amortize the ~0.35 us per-grid-step overhead while
    #    staying far inside VMEM.  128-aligned on every generation.
    if tile_b is None:
        if B <= 128:
            tile_b = _round_up(B, 8)
        else:
            tile_b = min(_MAX_TILE_B, _round_up(-(-B // 2), 128))

    grid = (pl.cdiv(B, tile_b),)

    out = pl.pallas_call(
        deepq_kernel,
        out_shape=jax.ShapeDtypeStruct((B, A), jnp.float32),
        grid=grid,
        in_specs=[
            # x: tiled over the batch axis; full (narrow) feature dim.
            pl.BlockSpec((tile_b, F), lambda i: (i, 0)),
            # Weights / biases: constant index_map -> DMA'd once, VMEM-resident.
            pl.BlockSpec((F, H), lambda i: (0, 0)),
            pl.BlockSpec((1, H), lambda i: (0, 0)),
            pl.BlockSpec((H, H), lambda i: (0, 0)),
            pl.BlockSpec((1, H), lambda i: (0, 0)),
            pl.BlockSpec((H, A), lambda i: (0, 0)),
            pl.BlockSpec((1, A), lambda i: (0, 0)),
        ],
        # Narrow real-width output block; ragged last block's edge rows are
        # masked on store (rows are independent, so garbage never leaks).
        out_specs=pl.BlockSpec((tile_b, A), lambda i: (i, 0)),
        compiler_params=pltpu.CompilerParams(
            dimension_semantics=("parallel",),
        ),
    )(x, w1, b1, w2, b2, w3, b3)

    return out


# ----------------------------------------------------------------------------
# Reference + init helpers
# ----------------------------------------------------------------------------
def ref_forward(x, w1, b1, w2, b2, w3, b3, *, use_bf16=True):
    """Pure-JAX reference mirroring the kernel's operand-dtype / f32-acc path."""
    cdt = jnp.bfloat16 if use_bf16 else jnp.float32
    x = x.astype(jnp.float32)
    h1 = jnp.dot(x.astype(cdt), w1.astype(cdt),
                 preferred_element_type=jnp.float32) + b1
    h2 = jnp.dot(h1.astype(cdt), w2.astype(cdt),
                 preferred_element_type=jnp.float32) + b2
    return jnp.dot(h2.astype(cdt), w3.astype(cdt),
                   preferred_element_type=jnp.float32) + b3


def init_linear(key, in_f, out_f):
    """Deterministic init matching nn.Linear's U(-1/sqrt(in), 1/sqrt(in))."""
    kw, kb = jax.random.split(key)
    bound = 1.0 / jnp.sqrt(jnp.float32(in_f))
    # PyTorch stores weight as (out, in); we keep (in, out) for the kernel.
    w = jax.random.uniform(kw, (in_f, out_f), jnp.float32, -bound, bound)
    b = jax.random.uniform(kb, (1, out_f), jnp.float32, -bound, bound)
    return w, b


if __name__ == "__main__":
    key = jax.random.PRNGKey(0)
    k_x, k_x2, k1, k2, k3 = jax.random.split(key, 5)

    input_dims = (8,)      # input_dims[0]
    hidden_dim = 256
    n_actions = 4

    w1, b1 = init_linear(k1, input_dims[0], hidden_dim)
    w2, b2 = init_linear(k2, hidden_dim, hidden_dim)
    w3, b3 = init_linear(k3, hidden_dim, n_actions)

    # One-time parameter prep (bf16 operands, f32 biases) — hoisted out of
    # the per-call forward path.
    params = prepare_params(w1, b1, w2, b2, w3, b3, use_bf16=True)

    # --- Small "online" batch (B=2): single tiny tile, grid=1 ---------------
    batch = 2
    x = jax.random.normal(k_x, (batch, input_dims[0]), jnp.float32)
    out = deepq_forward(x, *params)
    jax.block_until_ready(out)
    ref = ref_forward(x, w1, b1, w2, b2, w3, b3)
    assert out.shape == (batch, n_actions)
    assert jnp.allclose(out, ref, atol=2e-2, rtol=2e-2), \
        f"max err {jnp.max(jnp.abs(out - ref))}"

    # --- Replay-style batch (B=300): grid=2, ragged last block, 2-TC split --
    batch2 = 300
    x2 = jax.random.normal(k_x2, (batch2, input_dims[0]), jnp.float32)
    out2 = deepq_forward(x2, *params)
    jax.block_until_ready(out2)
    ref2 = ref_forward(x2, w1, b1, w2, b2, w3, b3)
    assert out2.shape == (batch2, n_actions)
    assert jnp.allclose(out2, ref2, atol=2e-2, rtol=2e-2), \
        f"max err {jnp.max(jnp.abs(out2 - ref2))}"

    print("KERNEL_OK")
</pallas_src>

<mosaic_0001>
module attributes {stable_mosaic.version = 11 : i64} {
  func.func @deepq_kernel(%arg0: i32, %arg1: memref<8x8xf32, #tpu.memory_space<vmem>>, %arg2: memref<8x256xbf16, #tpu.memory_space<vmem>>, %arg3: memref<1x256xf32, #tpu.memory_space<vmem>>, %arg4: memref<256x256xbf16, #tpu.memory_space<vmem>>, %arg5: memref<1x256xf32, #tpu.memory_space<vmem>>, %arg6: memref<256x4xbf16, #tpu.memory_space<vmem>>, %arg7: memref<1x4xf32, #tpu.memory_space<vmem>>, %arg8: memref<8x4xf32, #tpu.memory_space<vmem>>) attributes {dimension_semantics = [#tpu.dimension_semantics<parallel>], iteration_bounds = array<i64: 1>, scalar_prefetch = 0 : i64, scratch_operands = 0 : i64, tpu.core_type = #tpu.core_type<tc>, window_params = [{transform_indices = @transform_0, window_bounds = array<i64: 8, 8>}, {pipeline_mode = #tpu.pipeline_mode<synchronous>, transform_indices = @transform_1, window_bounds = array<i64: 8, 256>}, {pipeline_mode = #tpu.pipeline_mode<synchronous>, transform_indices = @transform_2, window_bounds = array<i64: 1, 256>}, {pipeline_mode = #tpu.pipeline_mode<synchronous>, transform_indices = @transform_3, window_bounds = array<i64: 256, 256>}, {pipeline_mode = #tpu.pipeline_mode<synchronous>, transform_indices = @transform_4, window_bounds = array<i64: 1, 256>}, {pipeline_mode = #tpu.pipeline_mode<synchronous>, transform_indices = @transform_5, window_bounds = array<i64: 256, 4>}, {pipeline_mode = #tpu.pipeline_mode<synchronous>, transform_indices = @transform_6, window_bounds = array<i64: 1, 4>}, {transform_indices = @transform_7, window_bounds = array<i64: 8, 4>}]} {
    %c0 = arith.constant 0 : index
    %c0_0 = arith.constant 0 : index
    %0 = vector.load %arg1[%c0, %c0_0] : memref<8x8xf32, #tpu.memory_space<vmem>>, vector<8x8xf32>
    %1 = arith.truncf %0 : vector<8x8xf32> to vector<8x8xbf16>
    %c0_1 = arith.constant 0 : index
    %c0_2 = arith.constant 0 : index
    %2 = vector.load %arg2[%c0_1, %c0_2] : memref<8x256xbf16, #tpu.memory_space<vmem>>, vector<8x256xbf16>
    %cst = arith.constant dense<0.000000e+00> : vector<8x256xf32>
    %3 = tpu.matmul %1, %2, %cst {dimension_numbers = #tpu.dot_dimension_numbers<[1], [0], [0], [1], [0, 0, 1, 1], [], []>} : vector<8x8xbf16>, vector<8x256xbf16>, vector<8x256xf32> -> vector<8x256xf32>
    %c0_3 = arith.constant 0 : index
    %c0_4 = arith.constant 0 : index
    %4 = vector.load %arg3[%c0_3, %c0_4] : memref<1x256xf32, #tpu.memory_space<vmem>>, vector<1x256xf32>
    %5 = vector.broadcast %4 : vector<1x256xf32> to vector<8x256xf32>
    %6 = arith.addf %3, %5 : vector<8x256xf32>
    %7 = arith.truncf %6 : vector<8x256xf32> to vector<8x256xbf16>
    %c0_5 = arith.constant 0 : index
    %c0_6 = arith.constant 0 : index
    %8 = vector.load %arg4[%c0_5, %c0_6] : memref<256x256xbf16, #tpu.memory_space<vmem>>, vector<256x256xbf16>
    %cst_7 = arith.constant dense<0.000000e+00> : vector<8x256xf32>
    %9 = tpu.matmul %7, %8, %cst_7 {dimension_numbers = #tpu.dot_dimension_numbers<[1], [0], [0], [1], [0, 0, 1, 1], [], []>} : vector<8x256xbf16>, vector<256x256xbf16>, vector<8x256xf32> -> vector<8x256xf32>
    %c0_8 = arith.constant 0 : index
    %c0_9 = arith.constant 0 : index
    %10 = vector.load %arg5[%c0_8, %c0_9] : memref<1x256xf32, #tpu.memory_space<vmem>>, vector<1x256xf32>
    %11 = vector.broadcast %10 : vector<1x256xf32> to vector<8x256xf32>
    %12 = arith.addf %9, %11 : vector<8x256xf32>
    %13 = arith.truncf %12 : vector<8x256xf32> to vector<8x256xbf16>
    %c0_10 = arith.constant 0 : index
    %c0_11 = arith.constant 0 : index
    %14 = vector.load %arg6[%c0_10, %c0_11] : memref<256x4xbf16, #tpu.memory_space<vmem>>, vector<256x4xbf16>
    %cst_12 = arith.constant dense<0.000000e+00> : vector<8x4xf32>
    %15 = tpu.matmul %13, %14, %cst_12 {dimension_numbers = #tpu.dot_dimension_numbers<[1], [0], [0], [1], [0, 0, 1, 1], [], []>} : vector<8x256xbf16>, vector<256x4xbf16>, vector<8x4xf32> -> vector<8x4xf32>
    %c0_13 = arith.constant 0 : index
    %c0_14 = arith.constant 0 : index
    %16 = vector.load %arg7[%c0_13, %c0_14] : memref<1x4xf32, #tpu.memory_space<vmem>>, vector<1x4xf32>
    %17 = vector.broadcast %16 : vector<1x4xf32> to vector<8x4xf32>
    %18 = arith.addf %15, %17 : vector<8x4xf32>
    %c0_15 = arith.constant 0 : index
    %c0_16 = arith.constant 0 : index
    %19 = vector.load %arg8[%c0_15, %c0_16] : memref<8x4xf32, #tpu.memory_space<vmem>>, vector<8x4xf32>
    tpu.vector_store %arg8[%c0_15, %c0_16], %18 {strides = array<i32>} : memref<8x4xf32, #tpu.memory_space<vmem>>, vector<8x4xf32>,
    return
  }
  func.func @transform_0(%arg0: i32) -> (i32, i32) {
    %c0_i32 = arith.constant 0 : i32
    %c0_i32_0 = arith.constant 0 : i32
    return %arg0, %c0_i32 : i32, i32
  }
  func.func @transform_1(%arg0: i32) -> (i32, i32) {
    %c0_i32 = arith.constant 0 : i32
    %c0_i32_0 = arith.constant 0 : i32
    %c0_i32_1 = arith.constant 0 : i32
    return %c0_i32, %c0_i32_0 : i32, i32
  }
  func.func @transform_2(%arg0: i32) -> (i32, i32) {
    %c0_i32 = arith.constant 0 : i32
    %c0_i32_0 = arith.constant 0 : i32
    %c0_i32_1 = arith.constant 0 : i32
    return %c0_i32, %c0_i32_0 : i32, i32
  }
  func.func @transform_3(%arg0: i32) -> (i32, i32) {
    %c0_i32 = arith.constant 0 : i32
    %c0_i32_0 = arith.constant 0 : i32
    %c0_i32_1 = arith.constant 0 : i32
    return %c0_i32, %c0_i32_0 : i32, i32
  }
  func.func @transform_4(%arg0: i32) -> (i32, i32) {
    %c0_i32 = arith.constant 0 : i32
    %c0_i32_0 = arith.constant 0 : i32
    %c0_i32_1 = arith.constant 0 : i32
    return %c0_i32, %c0_i32_0 : i32, i32
  }
  func.func @transform_5(%arg0: i32) -> (i32, i32) {
    %c0_i32 = arith.constant 0 : i32
    %c0_i32_0 = arith.constant 0 : i32
    %c0_i32_1 = arith.constant 0 : i32
    return %c0_i32, %c0_i32_0 : i32, i32
  }
  func.func @transform_6(%arg0: i32) -> (i32, i32) {
    %c0_i32 = arith.constant 0 : i32
    %c0_i32_0 = arith.constant 0 : i32
    %c0_i32_1 = arith.constant 0 : i32
    return %c0_i32, %c0_i32_0 : i32, i32
  }
  func.func @transform_7(%arg0: i32) -> (i32, i32) {
    %c0_i32 = arith.constant 0 : i32
    %c0_i32_0 = arith.constant 0 : i32
    return %arg0, %c0_i32 : i32, i32
  }
}

</mosaic_0001>

<llo_original>
// kernel: deepq_forward.1
$region0: #{deepq_forward.1}
  #allocation0 [shape = 'u32[]', space=smem, size = 0x4, offset = 0x4, fixed_abs, tag = 'smem constant byte address 0x4 - core index']
  #allocation1 [shape = 'u32[144,128]{1,0:T(1,128)}', space=vmem, size = 0x12000, scoped, tag = 'internal scratch']
  %s0 = inlined_call_operand.vmem [shape: f32[2,8], index: 0, kind: input, shape index: {}]
  %s1 = inlined_call_operand.vmem [shape: bf16[8,256], index: 1, kind: input, shape index: {}]
  %s2 = inlined_call_operand.vmem [shape: f32[1,256], index: 2, kind: input, shape index: {}]
  %s3 = inlined_call_operand.hbm [shape: bf16[256,256], index: 3, kind: input, shape index: {}]
  %s4 = inlined_call_operand.vmem [shape: f32[1,256], index: 4, kind: input, shape index: {}]
  %s5 = inlined_call_operand.vmem [shape: bf16[256,4], index: 5, kind: input, shape index: {}]
  %s6 = inlined_call_operand.vmem [shape: f32[1,4], index: 6, kind: input, shape index: {}]
  %s7 = inlined_call_operand.hbm [shape: f32[2,4], index: 7, kind: output, shape index: {}]
  %s8 = sld [smem:[#allocation0]]
  $region42: #{deepq_forward.1} parent=0
    _
  %s10 = ssub.s32 1, %s8
  %s11 = scalar_select 0, %s10, %s8
  $region1: #{deepq_forward.1} parent=0
    #allocation2 [shape = 'u8[131072]{0}', space=vmem, size = 0x20000, scoped, tag = 'input window, operand 3, single buffered']
    #allocation3 [shape = 's32[1]{0}', space=sflag, size = 0x4, scoped, tag = 'scoped memory for deepq_forward.1']
    #allocation4 [shape = 's32[1]{0}', space=sflag, size = 0x4, scoped, tag = 'scoped memory for deepq_forward.1']
    #allocation5 [shape = 'u8[4096]{0}', space=vmem, size = 0x1000, scoped, tag = 'output window, operand 0, single buffered']
    %12 = vsyncpa [#allocation3], 0
    %13 = vsyncpa [#allocation4], 0
    // Predicated region
    $region2: #{deepq_forward.1} parent=1 // pred_check
      _
    $region3: #{deepq_forward.1} parent=1 // pred_check_branch
      %15 = sbr.rel (0) target = $region5
    $region4: #{deepq_forward.1} parent=1 // pred_region
      _
    $region5: #{deepq_forward.1} parent=1 // pred_fallthru
      _
    // Predicated region
    $region6: #{deepq_forward.1} parent=1 // pred_check
      _
    $region7: #{deepq_forward.1} parent=1 // pred_check_branch
      %17 = sbr.rel (0) target = $region9
    $region8: #{deepq_forward.1} parent=1 // pred_region
      _
    $region9: #{deepq_forward.1} parent=1 // pred_fallthru
      _
    // Predicated region
    $region10: #{deepq_forward.1} parent=1 // pred_check
      _
    $region11: #{deepq_forward.1} parent=1 // pred_check_branch
      %19 = sbr.rel (0) target = $region13
    $region12: #{deepq_forward.1} parent=1 // pred_region
      _
    $region13: #{deepq_forward.1} parent=1 // pred_fallthru
      _
    // Predicated region
    $region14: #{deepq_forward.1} parent=1 // pred_check
      _
    $region15: #{deepq_forward.1} parent=1 // pred_check_branch
      %21 = sbr.rel (0) target = $region17
    $region16: #{deepq_forward.1} parent=1 // pred_region
      %s23 = ssub.s32 4096, 4096
      %24 = vsyncadd [#allocation3], %s23
      %s25 = sshll.u32 [#allocation2], 4
      %s26 = int_to_ptr.vmem [resolvable:$true] %s25
      %31 = dma.hbm_to_vmem [thread:$0]  %s3, 4096, %s26, [#allocation3], 128, 128, 8
    $region17: #{deepq_forward.1} parent=1 // pred_fallthru
      _
    // Predicated region
    $region18: #{deepq_forward.1} parent=1 // pred_check
      _
    $region19: #{deepq_forward.1} parent=1 // pred_check_branch
      %33 = sbr.rel (0) target = $region21
    $region20: #{deepq_forward.1} parent=1 // pred_region
      _
    $region21: #{deepq_forward.1} parent=1 // pred_fallthru
      _
    // Predicated region
    $region22: #{deepq_forward.1} parent=1 // pred_check
      _
    $region23: #{deepq_forward.1} parent=1 // pred_check_branch
      %35 = sbr.rel (0) target = $region25
    $region24: #{deepq_forward.1} parent=1 // pred_region
      _
    $region25: #{deepq_forward.1} parent=1 // pred_fallthru
      _
    // Predicated region
    $region26: #{deepq_forward.1} parent=1 // pred_check
      _
    $region27: #{deepq_forward.1} parent=1 // pred_check_branch
      %37 = sbr.rel (0) target = $region29
    $region28: #{deepq_forward.1} parent=1 // pred_region
      _
    $region29: #{deepq_forward.1} parent=1 // pred_fallthru
      _
    // Predicated region
    $region30: #{deepq_forward.1} parent=1 // pred_check
      _
    $region31: #{deepq_forward.1} parent=1 // pred_check_branch
      %39 = sbr.rel (0) target = $region33
    $region32: #{deepq_forward.1} parent=1 // pred_region
      %40 = dma.done [#allocation3], 4096
    $region33: #{deepq_forward.1} parent=1 // pred_fallthru
      _
    %v42 = vld [vmem:[%s0] sm:$0xff]
    %v43 = vpack.c.bf16 %v42, %v42
    %v44 = vld [vmem:[%s1] sm:$0xff]
    %v45 = vld [vmem:[%s2] sm:$0x3]
    %v47 = vlaneseq
    %v48 = vshrl.u32 %v47, 7
    %v49 = vsub.s32 0, %v48
    %v50 = vrot.slane %v45, %v49
    %v51 = vlaneseq
    %v52 = vshrl.u32 %v51, 7
    %v53 = vsub.s32 1, %v52
    %v54 = vrot.slane %v45, %v53
    %v58 = vunpack.c.l.b16 %v44
    %v59 = vunpack.c.h.b16 %v44
    %v60 = vpack.c.b16 %v58, %v58
    %v61 = vpack.c.b16 %v59, %v59
    %vm62 = vcmask 64512
    %v64 = vsel %vm62, %v43, 0
    %vm66 = vcmask 1043456
    %v68 = vsel %vm66, %v60, 0
    %v71 = vsel %vm66, %v61, 0
    %73 = vmatprep.subr.bf16.mxu0 %v71
    %74 = vmatpush1.bf16.msra.mxu0 %v68
    %75 = vmatprep.subr.bf16.mxu0 0
    %76 = vmatpush1.bf16.msra.mxu0 0
    %77 = vmatprep.subr.bf16.mxu0 0
    %78 = vmatpush1.bf16.msra.mxu0 0
    %79 = vmatprep.subr.bf16.mxu0 0
    %80 = vmatpush1.bf16.msra.mxu0 0
    %81 = vmatprep.subr.bf16.mxu0 0
    %82 = vmatpush1.bf16.msra.mxu0 0
    %83 = vmatprep.subr.bf16.mxu0 0
    %84 = vmatpush1.bf16.msra.mxu0 0
    %85 = vmatprep.subr.bf16.mxu0 0
    %86 = vmatpush1.bf16.msra.mxu0 0
    %87 = vmatprep.subr.bf16.mxu0 0
    %88 = vmatpush1.bf16.msra.mxu0 0
    %89 = vmatprep.subr.bf16.mxu0 0
    %90 = vmatpush1.bf16.msra.mxu0 0
    %91 = vmatprep.subr.bf16.mxu0 0
    %92 = vmatpush1.bf16.msra.mxu0 0
    %93 = vmatprep.subr.bf16.mxu0 0
    %94 = vmatpush1.bf16.msra.mxu0 0
    %95 = vmatprep.subr.bf16.mxu0 0
    %96 = vmatpush1.bf16.msra.mxu0 0
    %97 = vmatprep.subr.bf16.mxu0 0
    %98 = vmatpush1.bf16.msra.mxu0 0
    %99 = vmatprep.subr.bf16.mxu0 0
    %100 = vmatpush1.bf16.msra.mxu0 0
    %101 = vmatprep.subr.bf16.mxu0 0
    %102 = vmatpush1.bf16.msra.mxu0 0
    %103 = vmatprep.subr.bf16.mxu0 0
    %104 = vmatpush1.bf16.msra.mxu0 0
    %105 = vmatprep.mubr.bf16.mxu0 0
    %106 = vmatmul.mubr.bf16.gmra.mrb[0].mxu0 %v64
    %v107 = vpop.f32.mrb[0].mxu0
    %v108 = vadd.f32 %v50, %v107
    %v109 = vpop.f32.mrb[0].mxu0
    %v110 = vadd.f32 %v54, %v109
    %v111 = vpop.f32.mrb[0].mxu0
    %v112 = vpop.f32.mrb[0].mxu0
    %113 = vdwg.mxu0
    %v114 = vpack.c.bf16 %v108, %v108
    %v115 = vpack.c.bf16 %v110, %v110
    %v116 = vld [vmem:[#allocation2] sm:$0xff]
    %v117 = vld [vmem:[#allocation2 + $0x8] sm:$0xff]
    %v118 = vld [vmem:[#allocation2 + $0x10] sm:$0xff]
    %v119 = vld [vmem:[#allocation2 + $0x18] sm:$0xff]
    %v120 = vld [vmem:[#allocation2 + $0x20] sm:$0xff]
    %v121 = vld [vmem:[#allocation2 + $0x28] sm:$0xff]
    %v122 = vld [vmem:[#allocation2 + $0x30] sm:$0xff]
    %v123 = vld [vmem:[#allocation2 + $0x38] sm:$0xff]
    %v124 = vld [vmem:[#allocation2 + $0x40] sm:$0xff]
    %v125 = vld [vmem:[#allocation2 + $0x48] sm:$0xff]
    %v126 = vld [vmem:[#allocation2 + $0x50] sm:$0xff]
    %v127 = vld [vmem:[#allocation2 + $0x58] sm:$0xff]
    %v128 = vld [vmem:[#allocation2 + $0x60] sm:$0xff]
    %v129 = vld [vmem:[#allocation2 + $0x68] sm:$0xff]
    %v130 = vld [vmem:[#allocation2 + $0x70] sm:$0xff]
    %v131 = vld [vmem:[#allocation2 + $0x78] sm:$0xff]
    %v132 = vld [vmem:[#allocation2 + $0x80] sm:$0xff]
    %v133 = vld [vmem:[#allocation2 + $0x88] sm:$0xff]
    %v134 = vld [vmem:[#allocation2 + $0x90] sm:$0xff]
    %v135 = vld [vmem:[#allocation2 + $0x98] sm:$0xff]
    %v136 = vld [vmem:[#allocation2 + $0xa0] sm:$0xff]
    %v137 = vld [vmem:[#allocation2 + $0xa8] sm:$0xff]
    %v138 = vld [vmem:[#allocation2 + $0xb0] sm:$0xff]
    %v139 = vld [vmem:[#allocation2 + $0xb8] sm:$0xff]
    %v140 = vld [vmem:[#allocation2 + $0xc0] sm:$0xff]
    %v141 = vld [vmem:[#allocation2 + $0xc8] sm:$0xff]
    %v142 = vld [vmem:[#allocation2 + $0xd0] sm:$0xff]
    %v143 = vld [vmem:[#allocation2 + $0xd8] sm:$0xff]
    %v144 = vld [vmem:[#allocation2 + $0xe0] sm:$0xff]
    %v145 = vld [vmem:[#allocation2 + $0xe8] sm:$0xff]
    %v146 = vld [vmem:[#allocation2 + $0xf0] sm:$0xff]
    %v147 = vld [vmem:[#allocation2 + $0xf8] sm:$0xff]
    %v148 = vld [vmem:[%s4] sm:$0x3]
    %v150 = vlaneseq
    %v151 = vshrl.u32 %v150, 7
    %v152 = vsub.s32 0, %v151
    %v153 = vrot.slane %v148, %v152
    %v154 = vlaneseq
    %v155 = vshrl.u32 %v154, 7
    %v156 = vsub.s32 1, %v155
    %v157 = vrot.slane %v148, %v156
    %v192 = vunpack.c.l.b16 %v116
    %v193 = vunpack.c.h.b16 %v116
    %v194 = vunpack.c.l.b16 %v117
    %v195 = vunpack.c.h.b16 %v117
    %v196 = vunpack.c.l.b16 %v118
    %v197 = vunpack.c.h.b16 %v118
    %v198 = vunpack.c.l.b16 %v119
    %v199 = vunpack.c.h.b16 %v119
    %v200 = vunpack.c.l.b16 %v120
    %v201 = vunpack.c.h.b16 %v120
    %v202 = vunpack.c.l.b16 %v121
    %v203 = vunpack.c.h.b16 %v121
    %v204 = vunpack.c.l.b16 %v122
    %v205 = vunpack.c.h.b16 %v122
    %v206 = vunpack.c.l.b16 %v123
    %v207 = vunpack.c.h.b16 %v123
    %v208 = vunpack.c.l.b16 %v124
    %v209 = vunpack.c.h.b16 %v124
    %v210 = vunpack.c.l.b16 %v125
    %v211 = vunpack.c.h.b16 %v125
    %v212 = vunpack.c.l.b16 %v126
    %v213 = vunpack.c.h.b16 %v126
    %v214 = vunpack.c.l.b16 %v127
    %v215 = vunpack.c.h.b16 %v127
    %v216 = vunpack.c.l.b16 %v128
    %v217 = vunpack.c.h.b16 %v128
    %v218 = vunpack.c.l.b16 %v129
    %v219 = vunpack.c.h.b16 %v129
    %v220 = vunpack.c.l.b16 %v130
    %v221 = vunpack.c.h.b16 %v130
    %v222 = vunpack.c.l.b16 %v131
    %v223 = vunpack.c.h.b16 %v131
    %v224 = vunpack.c.l.b16 %v132
    %v225 = vunpack.c.h.b16 %v132
    %v226 = vunpack.c.l.b16 %v133
    %v227 = vunpack.c.h.b16 %v133
    %v228 = vunpack.c.l.b16 %v134
    %v229 = vunpack.c.h.b16 %v134
    %v230 = vunpack.c.l.b16 %v135
    %v231 = vunpack.c.h.b16 %v135
    %v232 = vunpack.c.l.b16 %v136
    %v233 = vunpack.c.h.b16 %v136
    %v234 = vunpack.c.l.b16 %v137
    %v235 = vunpack.c.h.b16 %v137
    %v236 = vunpack.c.l.b16 %v138
    %v237 = vunpack.c.h.b16 %v138
    %v238 = vunpack.c.l.b16 %v139
    %v239 = vunpack.c.h.b16 %v139
    %v240 = vunpack.c.l.b16 %v140
    %v241 = vunpack.c.h.b16 %v140
    %v242 = vunpack.c.l.b16 %v141
    %v243 = vunpack.c.h.b16 %v141
    %v244 = vunpack.c.l.b16 %v142
    %v245 = vunpack.c.h.b16 %v142
    %v246 = vunpack.c.l.b16 %v143
    %v247 = vunpack.c.h.b16 %v143
    %v248 = vunpack.c.l.b16 %v144
    %v249 = vunpack.c.h.b16 %v144
    %v250 = vunpack.c.l.b16 %v145
    %v251 = vunpack.c.h.b16 %v145
    %v252 = vunpack.c.l.b16 %v146
    %v253 = vunpack.c.h.b16 %v146
    %v254 = vunpack.c.l.b16 %v147
    %v255 = vunpack.c.h.b16 %v147
    %v256 = vpack.c.b16 %v194, %v192
    %v257 = vpack.c.b16 %v195, %v193
    %v258 = vpack.c.b16 %v198, %v196
    %v259 = vpack.c.b16 %v199, %v197
    %v260 = vpack.c.b16 %v202, %v200
    %v261 = vpack.c.b16 %v203, %v201
    %v262 = vpack.c.b16 %v206, %v204
    %v263 = vpack.c.b16 %v207, %v205
    %v264 = vpack.c.b16 %v210, %v208
    %v265 = vpack.c.b16 %v211, %v209
    %v266 = vpack.c.b16 %v214, %v212
    %v267 = vpack.c.b16 %v215, %v213
    %v268 = vpack.c.b16 %v218, %v216
    %v269 = vpack.c.b16 %v219, %v217
    %v270 = vpack.c.b16 %v222, %v220
    %v271 = vpack.c.b16 %v223, %v221
    %v272 = vpack.c.b16 %v226, %v224
    %v273 = vpack.c.b16 %v227, %v225
    %v274 = vpack.c.b16 %v230, %v228
    %v275 = vpack.c.b16 %v231, %v229
    %v276 = vpack.c.b16 %v234, %v232
    %v277 = vpack.c.b16 %v235, %v233
    %v278 = vpack.c.b16 %v238, %v236
    %v279 = vpack.c.b16 %v239, %v237
    %v280 = vpack.c.b16 %v242, %v240
    %v281 = vpack.c.b16 %v243, %v241
    %v282 = vpack.c.b16 %v246, %v244
    %v283 = vpack.c.b16 %v247, %v245
    %v284 = vpack.c.b16 %v250, %v248
    %v285 = vpack.c.b16 %v251, %v249
    %v286 = vpack.c.b16 %v254, %v252
    %v287 = vpack.c.b16 %v255, %v253
    %320 = vmatprep.subr.bf16.mxu0 %v257
    %321 = vmatpush1.bf16.msra.mxu0 %v256
    %322 = vmatprep.subr.bf16.mxu0 %v259
    %323 = vmatpush1.bf16.msra.mxu0 %v258
    %324 = vmatprep.subr.bf16.mxu0 %v261
    %325 = vmatpush1.bf16.msra.mxu0 %v260
    %326 = vmatprep.subr.bf16.mxu0 %v263
    %327 = vmatpush1.bf16.msra.mxu0 %v262
    %328 = vmatprep.subr.bf16.mxu0 %v265
    %329 = vmatpush1.bf16.msra.mxu0 %v264
    %330 = vmatprep.subr.bf16.mxu0 %v267
    %331 = vmatpush1.bf16.msra.mxu0 %v266
    %332 = vmatprep.subr.bf16.mxu0 %v269
    %333 = vmatpush1.bf16.msra.mxu0 %v268
    %334 = vmatprep.subr.bf16.mxu0 %v271
    %335 = vmatpush1.bf16.msra.mxu0 %v270
    %336 = vmatprep.subr.bf16.mxu0 %v273
    %337 = vmatpush1.bf16.msra.mxu0 %v272
    %338 = vmatprep.subr.bf16.mxu0 %v275
    %339 = vmatpush1.bf16.msra.mxu0 %v274
    %340 = vmatprep.subr.bf16.mxu0 %v277
    %341 = vmatpush1.bf16.msra.mxu0 %v276
    %342 = vmatprep.subr.bf16.mxu0 %v279
    %343 = vmatpush1.bf16.msra.mxu0 %v278
    %344 = vmatprep.subr.bf16.mxu0 %v281
    %345 = vmatpush1.bf16.msra.mxu0 %v280
    %346 = vmatprep.subr.bf16.mxu0 %v283
    %347 = vmatpush1.bf16.msra.mxu0 %v282
    %348 = vmatprep.subr.bf16.mxu0 %v285
    %349 = vmatpush1.bf16.msra.mxu0 %v284
    %350 = vmatprep.subr.bf16.mxu0 %v287
    %351 = vmatpush1.bf16.msra.mxu0 %v286
    %352 = vmatprep.mubr.bf16.mxu0 %v115
    %353 = vmatmul.mubr.bf16.gmra.mrb[0].mxu0 %v114
    %v354 = vpop.f32.mrb[0].mxu0
    %v355 = vadd.f32 %v153, %v354
    %v356 = vpop.f32.mrb[0].mxu0
    %v357 = vadd.f32 %v157, %v356
    %v358 = vpop.f32.mrb[0].mxu0
    %v359 = vpop.f32.mrb[0].mxu0
    %360 = vdwg.mxu0
    %v361 = vpack.c.bf16 %v355, %v355
    %v362 = vpack.c.bf16 %v357, %v357
    %v363 = vld [vmem:[%s5] sm:$0xf]
    %v364 = vld [vmem:[%s5 + $0x4] sm:$0xf]
    %v365 = vld [vmem:[%s5 + $0x8] sm:$0xf]
    %v366 = vld [vmem:[%s5 + $0xc] sm:$0xf]
    %v367 = vld [vmem:[%s5 + $0x10] sm:$0xf]
    %v368 = vld [vmem:[%s5 + $0x14] sm:$0xf]
    %v369 = vld [vmem:[%s5 + $0x18] sm:$0xf]
    %v370 = vld [vmem:[%s5 + $0x1c] sm:$0xf]
    %v371 = vld [vmem:[%s5 + $0x20] sm:$0xf]
    %v372 = vld [vmem:[%s5 + $0x24] sm:$0xf]
    %v373 = vld [vmem:[%s5 + $0x28] sm:$0xf]
    %v374 = vld [vmem:[%s5 + $0x2c] sm:$0xf]
    %v375 = vld [vmem:[%s5 + $0x30] sm:$0xf]
    %v376 = vld [vmem:[%s5 + $0x34] sm:$0xf]
    %v377 = vld [vmem:[%s5 + $0x38] sm:$0xf]
    %v378 = vld [vmem:[%s5 + $0x3c] sm:$0xf]
    %v379 = vld [vmem:[%s5 + $0x40] sm:$0xf]
    %v380 = vld [vmem:[%s5 + $0x44] sm:$0xf]
    %v381 = vld [vmem:[%s5 + $0x48] sm:$0xf]
    %v382 = vld [vmem:[%s5 + $0x4c] sm:$0xf]
    %v383 = vld [vmem:[%s5 + $0x50] sm:$0xf]
    %v384 = vld [vmem:[%s5 + $0x54] sm:$0xf]
    %v385 = vld [vmem:[%s5 + $0x58] sm:$0xf]
    %v386 = vld [vmem:[%s5 + $0x5c] sm:$0xf]
    %v387 = vld [vmem:[%s5 + $0x60] sm:$0xf]
    %v388 = vld [vmem:[%s5 + $0x64] sm:$0xf]
    %v389 = vld [vmem:[%s5 + $0x68] sm:$0xf]
    %v390 = vld [vmem:[%s5 + $0x6c] sm:$0xf]
    %v391 = vld [vmem:[%s5 + $0x70] sm:$0xf]
    %v392 = vld [vmem:[%s5 + $0x74] sm:$0xf]
    %v393 = vld [vmem:[%s5 + $0x78] sm:$0xf]
    %v394 = vld [vmem:[%s5 + $0x7c] sm:$0xf]
    %v395 = vld [vmem:[%s6] sm:$0x1]
    %v397 = vlaneseq
    %v398 = vshrl.u32 %v397, 7
    %v399 = vsub.s32 0, %v398
    %v400 = vrot.slane %v395, %v399
    %v434 = vunpack.c.l.b16 %v363
    %v435 = vunpack.c.l.b16 %v364
    %v436 = vunpack.c.l.b16 %v365
    %v437 = vunpack.c.l.b16 %v366
    %v438 = vunpack.c.l.b16 %v367
    %v439 = vunpack.c.l.b16 %v368
    %v440 = vunpack.c.l.b16 %v369
    %v441 = vunpack.c.l.b16 %v370
    %v442 = vunpack.c.l.b16 %v371
    %v443 = vunpack.c.l.b16 %v372
    %v444 = vunpack.c.l.b16 %v373
    %v445 = vunpack.c.l.b16 %v374
    %v446 = vunpack.c.l.b16 %v375
    %v447 = vunpack.c.l.b16 %v376
    %v448 = vunpack.c.l.b16 %v377
    %v449 = vunpack.c.l.b16 %v378
    %v450 = vunpack.c.l.b16 %v379
    %v451 = vunpack.c.l.b16 %v380
    %v452 = vunpack.c.l.b16 %v381
    %v453 = vunpack.c.l.b16 %v382
    %v454 = vunpack.c.l.b16 %v383
    %v455 = vunpack.c.l.b16 %v384
    %v456 = vunpack.c.l.b16 %v385
    %v457 = vunpack.c.l.b16 %v386
    %v458 = vunpack.c.l.b16 %v387
    %v459 = vunpack.c.l.b16 %v388
    %v460 = vunpack.c.l.b16 %v389
    %v461 = vunpack.c.l.b16 %v390
    %v462 = vunpack.c.l.b16 %v391
    %v463 = vunpack.c.l.b16 %v392
    %v464 = vunpack.c.l.b16 %v393
    %v465 = vunpack.c.l.b16 %v394
    %v466 = vpack.c.b16 %v435, %v434
    %v467 = vpack.c.b16 %v437, %v436
    %v468 = vpack.c.b16 %v439, %v438
    %v469 = vpack.c.b16 %v441, %v440
    %v470 = vpack.c.b16 %v443, %v442
    %v471 = vpack.c.b16 %v445, %v444
    %v472 = vpack.c.b16 %v447, %v446
    %v473 = vpack.c.b16 %v449, %v448
    %v474 = vpack.c.b16 %v451, %v450
    %v475 = vpack.c.b16 %v453, %v452
    %v476 = vpack.c.b16 %v455, %v454
    %v477 = vpack.c.b16 %v457, %v456
    %v478 = vpack.c.b16 %v459, %v458
    %v479 = vpack.c.b16 %v461, %v460
    %v480 = vpack.c.b16 %v463, %v462
    %v481 = vpack.c.b16 %v465, %v464
    %498 = vmatprep.subr.bf16.mxu0 0
    %499 = vmatpush1.bf16.msra.mxu0 %v466
    %500 = vmatprep.subr.bf16.mxu0 0
    %501 = vmatpush1.bf16.msra.mxu0 %v467
    %502 = vmatprep.subr.bf16.mxu0 0
    %503 = vmatpush1.bf16.msra.mxu0 %v468
    %504 = vmatprep.subr.bf16.mxu0 0
    %505 = vmatpush1.bf16.msra.mxu0 %v469
    %506 = vmatprep.subr.bf16.mxu0 0
    %507 = vmatpush1.bf16.msra.mxu0 %v470
    %508 = vmatprep.subr.bf16.mxu0 0
    %509 = vmatpush1.bf16.msra.mxu0 %v471
    %510 = vmatprep.subr.bf16.mxu0 0
    %511 = vmatpush1.bf16.msra.mxu0 %v472
    %512 = vmatprep.subr.bf16.mxu0 0
    %513 = vmatpush1.bf16.msra.mxu0 %v473
    %514 = vmatprep.subr.bf16.mxu0 0
    %515 = vmatpush1.bf16.msra.mxu0 %v474
    %516 = vmatprep.subr.bf16.mxu0 0
    %517 = vmatpush1.bf16.msra.mxu0 %v475
    %518 = vmatprep.subr.bf16.mxu0 0
    %519 = vmatpush1.bf16.msra.mxu0 %v476
    %520 = vmatprep.subr.bf16.mxu0 0
    %521 = vmatpush1.bf16.msra.mxu0 %v477
    %522 = vmatprep.subr.bf16.mxu0 0
    %523 = vmatpush1.bf16.msra.mxu0 %v478
    %524 = vmatprep.subr.bf16.mxu0 0
    %525 = vmatpush1.bf16.msra.mxu0 %v479
    %526 = vmatprep.subr.bf16.mxu0 0
    %527 = vmatpush1.bf16.msra.mxu0 %v480
    %528 = vmatprep.subr.bf16.mxu0 0
    %529 = vmatpush1.bf16.msra.mxu0 %v481
    %530 = vmatprep.mubr.bf16.mxu0 %v362
    %531 = vmatmul.mubr.bf16.gmra.mrb[0].mxu0 %v361
    %v532 = vpop.f32.mrb[0].mxu0
    %v533 = vadd.f32 %v400, %v532
    %v534 = vpop.f32.mrb[0].mxu0
    %v535 = vpop.f32.mrb[0].mxu0
    %v536 = vpop.f32.mrb[0].mxu0
    %537 = vdwg.mxu0
    %vm538 = vcmask 31744
    %539 = vst.msk [vmem:[#allocation5] sm:$0xff] %vm538, %v533
    // Predicated region
    $region34: #{deepq_forward.1} parent=1 // pred_check
      _
    $region35: #{deepq_forward.1} parent=1 // pred_check_branch
      %541 = sbr.rel (0) target = $region37
    $region36: #{deepq_forward.1} parent=1 // pred_region
      %s543 = ssub.s32 128, 32
      %544 = vsyncadd [#allocation4], %s543
      %s545 = sshll.u32 [#allocation5], 4
      %s546 = int_to_ptr.vmem [resolvable:$true] %s545
      %551 = dma.vmem_to_hbm [thread:$0]  %s546, 32, %s7, [#allocation4], 32, 32, 2
    $region37: #{deepq_forward.1} parent=1 // pred_fallthru
      _
    // Predicated region
    $region38: #{deepq_forward.1} parent=1 // pred_check
      _
    $region39: #{deepq_forward.1} parent=1 // pred_check_branch
      %553 = sbr.rel (0) target = $region41
    $region40: #{deepq_forward.1} parent=1 // pred_region
      %554 = dma.done [#allocation4], 128
    $region41: #{deepq_forward.1} parent=1 // pred_fallthru
      _
    %555 = vsyncpa [#allocation3], 1
    %556 = vsyncpa [#allocation4], 1

</llo_original>
